<compile_context>
chip_gen: v7x
topology: tpu7x:2x2x1
jax: 0.10.0
libtpu: 0.0.40
codegen_flags: <defaults>
</compile_context>

<pallas_src>
import jax
import jax.numpy as jnp
from jax.experimental import pallas as pl
from jax.experimental.pallas import tpu as pltpu

INPUT_FEATURES = 12
HIDDEN1 = 10
HIDDEN2 = 6
OUT_FEATURES = 2

LANE = 128  # TPU lane width; batch tiles are multiples of this


def mlp_kernel(x_ref, w1_ref, b1_ref, w2_ref, b2_ref, w3_ref, b3_ref, o_ref):
    # x_ref: [12, TB]   w*: [out, in]   b*: [out, 1] (f32)   o_ref: [2, TB] (f32)
    x = x_ref[...]

    # Layer 1: relu(W1 @ x + b1), f32 accumulate on the MXU.
    h1 = jnp.dot(w1_ref[...], x, preferred_element_type=jnp.float32)
    h1 = jnp.maximum(h1 + b1_ref[...], 0.0)
    h1 = h1.astype(w2_ref.dtype)  # feed MXU in compute dtype (f32 or bf16)

    # Layer 2: relu(W2 @ h1 + b2).
    h2 = jnp.dot(w2_ref[...], h1, preferred_element_type=jnp.float32)
    h2 = jnp.maximum(h2 + b2_ref[...], 0.0)
    h2 = h2.astype(w3_ref.dtype)

    # Output layer: W3 @ h2 + b3 (no activation).
    out = jnp.dot(w3_ref[...], h2, preferred_element_type=jnp.float32)
    o_ref[...] = (out + b3_ref[...]).astype(o_ref.dtype)


def _chip_profile():
    """Per-generation VMEM budget and TensorCore count (conservative on unknown)."""
    kind = ""
    try:
        kind = jax.devices()[0].device_kind.lower()
    except Exception:
        pass
    if any(tag in kind for tag in ("v4", "v5", "v6")):
        # v4/v5e/v6e: 128 MiB physical VMEM, 1 TensorCore per chip.
        return {"vmem_limit": 100 * 1024 * 1024, "two_tc": False}
    # v7x (and unknown): 64 MiB physical VMEM, 2 TensorCores per chip.
    return {"vmem_limit": 48 * 1024 * 1024, "two_tc": True}


def _default_tile_batch(cols, compute_dtype, profile):
    """Pick the largest lane-aligned batch tile that fits the VMEM budget."""
    dsize = jnp.dtype(compute_dtype).itemsize
    # Per-column VMEM bytes: double-buffered x tile (padded to 16 sublanes in
    # compute dtype) + double-buffered out tile (8 sublanes f32) + f32 h1/h2
    # temporaries + slack for casts/vregs.
    per_col = 2 * 16 * dsize + 2 * 8 * 4 + (16 + 8) * 4 + 32
    budget = max(profile["vmem_limit"] - 8 * 1024 * 1024, 4 * 1024 * 1024)
    max_tb = (budget // per_col) // LANE * LANE
    hard_cap = 65536 if dsize <= 2 else 32768  # per perf review sweep guidance
    max_tb = max(LANE, min(int(max_tb), hard_cap))
    tb = min(max_tb, cols)
    # On dual-TensorCore chips keep >= 2 grid tiles so both cores get work.
    if profile["two_tc"] and cols >= 2 * LANE:
        half = pl.cdiv(pl.cdiv(cols, 2), LANE) * LANE
        tb = min(tb, half)
    return int(max(LANE, tb))


def ann_model_forward(x, params, *, compute_dtype=jnp.bfloat16, tile_batch=None,
                      feature_major_input=False, feature_major_output=False):
    """Forward pass of ANN_Model.

    x: [B, 12] float32 (default, PyTorch layout) or [12, B] if
       feature_major_input=True (skips the wrapper transpose HBM pass).
    Returns [B, 2] float32, or [2, B] if feature_major_output=True.

    Note: with the default bf16 compute dtype the inter-layer activations are
    also rounded to bf16 before the next dot; accumulation stays f32.
    """
    w1, b1, w2, b2, w3, b3 = params

    if feature_major_input:
        xT = x.astype(compute_dtype)                 # [12, B] already
        B = x.shape[1]
    else:
        B = x.shape[0]
        xT = jnp.transpose(x).astype(compute_dtype)  # [12, B]

    profile = _chip_profile()
    cols = pl.cdiv(B, LANE) * LANE
    TB = int(tile_batch) if tile_batch is not None else _default_tile_batch(
        cols, compute_dtype, profile)
    n_tiles = pl.cdiv(B, TB)
    Bp = n_tiles * TB

    if Bp != B:
        xT = jnp.pad(xT, ((0, 0), (0, Bp - B)))  # padded tail columns are zeros

    # Weights in compute dtype; biases stay f32 (pure f32 VALU add/ReLU path).
    w1c = w1.astype(compute_dtype)
    w2c = w2.astype(compute_dtype)
    w3c = w3.astype(compute_dtype)
    b1f = b1.astype(jnp.float32)
    b2f = b2.astype(jnp.float32)
    b3f = b3.astype(jnp.float32)

    dsize = jnp.dtype(compute_dtype).itemsize
    weight_bytes = (w1c.size + w2c.size + w3c.size) * dsize \
        + (b1f.size + b2f.size + b3f.size) * 4
    cost = pl.CostEstimate(
        flops=2 * Bp * (INPUT_FEATURES * HIDDEN1 + HIDDEN1 * HIDDEN2 + HIDDEN2 * OUT_FEATURES),
        transcendentals=0,
        # Padded physical traffic: x pads 12 -> 16 sublanes, out pads 2 -> 8.
        bytes_accessed=Bp * 16 * dsize + Bp * 8 * 4 + int(weight_bytes),
    )

    const = lambda i: (0, 0)  # weights/biases: DMA'd once, stay resident in VMEM

    outT = pl.pallas_call(
        mlp_kernel,
        out_shape=jax.ShapeDtypeStruct((OUT_FEATURES, Bp), jnp.float32),
        grid=(n_tiles,),
        in_specs=[
            pl.BlockSpec((INPUT_FEATURES, TB), lambda i: (0, i)),   # x tile, pipelined
            pl.BlockSpec((HIDDEN1, INPUT_FEATURES), const),         # W1
            pl.BlockSpec((HIDDEN1, 1), const),                      # b1
            pl.BlockSpec((HIDDEN2, HIDDEN1), const),                # W2
            pl.BlockSpec((HIDDEN2, 1), const),                      # b2
            pl.BlockSpec((OUT_FEATURES, HIDDEN2), const),           # W3
            pl.BlockSpec((OUT_FEATURES, 1), const),                 # b3
        ],
        out_specs=pl.BlockSpec((OUT_FEATURES, TB), lambda i: (0, i)),  # lane-dense [2, TB]
        compiler_params=pltpu.CompilerParams(
            dimension_semantics=("parallel",),             # shard batch tiles across TCs
            vmem_limit_bytes=int(profile["vmem_limit"]),   # sized per generation
        ),
        cost_estimate=cost,
    )(xT, w1c, b1f, w2c, b2f, w3c, b3f)

    outT = outT[:, :B]
    if feature_major_output:
        return outT                       # [2, B] f32, no extra HBM pass
    return jnp.transpose(outT)            # [B, 2] f32


def init_params(key):
    """PyTorch nn.Linear-style params: W [out, in], b [out, 1], U(-1/sqrt(fan_in), ...)."""
    def linear(key, fan_in, fan_out):
        kw, kb = jax.random.split(key)
        bound = 1.0 / jnp.sqrt(jnp.float32(fan_in))
        w = jax.random.uniform(kw, (fan_out, fan_in), jnp.float32, -bound, bound)
        b = jax.random.uniform(kb, (fan_out, 1), jnp.float32, -bound, bound)
        return w, b

    k1, k2, k3 = jax.random.split(key, 3)
    w1, b1 = linear(k1, INPUT_FEATURES, HIDDEN1)
    w2, b2 = linear(k2, HIDDEN1, HIDDEN2)
    w3, b3 = linear(k3, HIDDEN2, OUT_FEATURES)
    return (w1, b1, w2, b2, w3, b3)


def reference_forward(x, params):
    w1, b1, w2, b2, w3, b3 = params
    h1 = jnp.maximum(x @ w1.T + b1.T, 0.0)
    h2 = jnp.maximum(h1 @ w2.T + b2.T, 0.0)
    return h2 @ w3.T + b3.T


if __name__ == "__main__":
    key = jax.random.PRNGKey(0)
    kx, kp = jax.random.split(key)

    batch = 8
    x = jax.random.normal(kx, (batch, INPUT_FEATURES), jnp.float32)
    params = init_params(kp)
    ref = reference_forward(x, params)

    # f32 path: exact match vs. reference.
    out_f32 = jax.block_until_ready(ann_model_forward(x, params, compute_dtype=jnp.float32))
    assert out_f32.shape == (batch, OUT_FEATURES)
    assert jnp.allclose(out_f32, ref, atol=1e-5, rtol=1e-5), "f32 mismatch vs reference"

    # Default path: bf16 inputs/weights/activations, f32 accumulate => loose tolerance.
    out_bf16 = jax.block_until_ready(ann_model_forward(x, params))
    assert out_bf16.shape == (batch, OUT_FEATURES)
    assert jnp.allclose(out_bf16, ref, atol=3e-2, rtol=3e-2), "bf16 mismatch vs reference"

    # Feature-major fast path: skips the wrapper-side transpose HBM passes.
    xT = jnp.transpose(x)
    outT = jax.block_until_ready(
        ann_model_forward(xT, params, compute_dtype=jnp.float32,
                          feature_major_input=True, feature_major_output=True))
    assert outT.shape == (OUT_FEATURES, batch)
    assert jnp.allclose(jnp.transpose(outT), ref, atol=1e-5, rtol=1e-5), \
        "feature-major mismatch vs reference"

    print("KERNEL_OK")
</pallas_src>

<mosaic_0001>
module attributes {stable_mosaic.version = 11 : i64} {
  func.func @mlp_kernel(%arg0: i32, %arg1: memref<12x128xf32, #tpu.memory_space<vmem>>, %arg2: memref<10x12xf32, #tpu.memory_space<vmem>>, %arg3: memref<10x1xf32, #tpu.memory_space<vmem>>, %arg4: memref<6x10xf32, #tpu.memory_space<vmem>>, %arg5: memref<6x1xf32, #tpu.memory_space<vmem>>, %arg6: memref<2x6xf32, #tpu.memory_space<vmem>>, %arg7: memref<2x1xf32, #tpu.memory_space<vmem>>, %arg8: memref<2x128xf32, #tpu.memory_space<vmem>>) attributes {dimension_semantics = [#tpu.dimension_semantics<parallel>], iteration_bounds = array<i64: 1>, scalar_prefetch = 0 : i64, scratch_operands = 0 : i64, tpu.core_type = #tpu.core_type<tc>, window_params = [{transform_indices = @transform_0, window_bounds = array<i64: 12, 128>}, {pipeline_mode = #tpu.pipeline_mode<synchronous>, transform_indices = @transform_1, window_bounds = array<i64: 10, 12>}, {pipeline_mode = #tpu.pipeline_mode<synchronous>, transform_indices = @transform_2, window_bounds = array<i64: 10, 1>}, {pipeline_mode = #tpu.pipeline_mode<synchronous>, transform_indices = @transform_3, window_bounds = array<i64: 6, 10>}, {pipeline_mode = #tpu.pipeline_mode<synchronous>, transform_indices = @transform_4, window_bounds = array<i64: 6, 1>}, {pipeline_mode = #tpu.pipeline_mode<synchronous>, transform_indices = @transform_5, window_bounds = array<i64: 2, 6>}, {pipeline_mode = #tpu.pipeline_mode<synchronous>, transform_indices = @transform_6, window_bounds = array<i64: 2, 1>}, {transform_indices = @transform_7, window_bounds = array<i64: 2, 128>}]} {
    %c0 = arith.constant 0 : index
    %c0_0 = arith.constant 0 : index
    %0 = vector.load %arg1[%c0, %c0_0] : memref<12x128xf32, #tpu.memory_space<vmem>>, vector<12x128xf32>
    %c0_1 = arith.constant 0 : index
    %c0_2 = arith.constant 0 : index
    %1 = vector.load %arg2[%c0_1, %c0_2] : memref<10x12xf32, #tpu.memory_space<vmem>>, vector<10x12xf32>
    %cst = arith.constant dense<0.000000e+00> : vector<10x128xf32>
    %2 = tpu.matmul %1, %0, %cst {dimension_numbers = #tpu.dot_dimension_numbers<[1], [0], [0], [1], [0, 0, 1, 1], [], []>} : vector<10x12xf32>, vector<12x128xf32>, vector<10x128xf32> -> vector<10x128xf32>
    %c0_3 = arith.constant 0 : index
    %c0_4 = arith.constant 0 : index
    %3 = vector.load %arg3[%c0_3, %c0_4] : memref<10x1xf32, #tpu.memory_space<vmem>>, vector<10x1xf32>
    %4 = vector.broadcast %3 : vector<10x1xf32> to vector<10x128xf32>
    %5 = arith.addf %2, %4 : vector<10x128xf32>
    %cst_5 = arith.constant 0.000000e+00 : f32
    %6 = vector.broadcast %cst_5 : f32 to vector<10x128xf32>
    %7 = arith.maximumf %5, %6 : vector<10x128xf32>
    %c0_6 = arith.constant 0 : index
    %c0_7 = arith.constant 0 : index
    %8 = vector.load %arg4[%c0_6, %c0_7] : memref<6x10xf32, #tpu.memory_space<vmem>>, vector<6x10xf32>
    %cst_8 = arith.constant dense<0.000000e+00> : vector<6x128xf32>
    %9 = tpu.matmul %8, %7, %cst_8 {dimension_numbers = #tpu.dot_dimension_numbers<[1], [0], [0], [1], [0, 0, 1, 1], [], []>} : vector<6x10xf32>, vector<10x128xf32>, vector<6x128xf32> -> vector<6x128xf32>
    %c0_9 = arith.constant 0 : index
    %c0_10 = arith.constant 0 : index
    %10 = vector.load %arg5[%c0_9, %c0_10] : memref<6x1xf32, #tpu.memory_space<vmem>>, vector<6x1xf32>
    %11 = vector.broadcast %10 : vector<6x1xf32> to vector<6x128xf32>
    %12 = arith.addf %9, %11 : vector<6x128xf32>
    %cst_11 = arith.constant 0.000000e+00 : f32
    %13 = vector.broadcast %cst_11 : f32 to vector<6x128xf32>
    %14 = arith.maximumf %12, %13 : vector<6x128xf32>
    %c0_12 = arith.constant 0 : index
    %c0_13 = arith.constant 0 : index
    %15 = vector.load %arg6[%c0_12, %c0_13] : memref<2x6xf32, #tpu.memory_space<vmem>>, vector<2x6xf32>
    %cst_14 = arith.constant dense<0.000000e+00> : vector<2x128xf32>
    %16 = tpu.matmul %15, %14, %cst_14 {dimension_numbers = #tpu.dot_dimension_numbers<[1], [0], [0], [1], [0, 0, 1, 1], [], []>} : vector<2x6xf32>, vector<6x128xf32>, vector<2x128xf32> -> vector<2x128xf32>
    %c0_15 = arith.constant 0 : index
    %c0_16 = arith.constant 0 : index
    %17 = vector.load %arg7[%c0_15, %c0_16] : memref<2x1xf32, #tpu.memory_space<vmem>>, vector<2x1xf32>
    %18 = vector.broadcast %17 : vector<2x1xf32> to vector<2x128xf32>
    %19 = arith.addf %16, %18 : vector<2x128xf32>
    %c0_17 = arith.constant 0 : index
    %c0_18 = arith.constant 0 : index
    %20 = vector.load %arg8[%c0_17, %c0_18] : memref<2x128xf32, #tpu.memory_space<vmem>>, vector<2x128xf32>
    tpu.vector_store %arg8[%c0_17, %c0_18], %19 {strides = array<i32>} : memref<2x128xf32, #tpu.memory_space<vmem>>, vector<2x128xf32>,
    return
  }
  func.func @transform_0(%arg0: i32) -> (i32, i32) {
    %c0_i32 = arith.constant 0 : i32
    %c0_i32_0 = arith.constant 0 : i32
    return %c0_i32, %arg0 : i32, i32
  }
  func.func @transform_1(%arg0: i32) -> (i32, i32) {
    %c0_i32 = arith.constant 0 : i32
    %c0_i32_0 = arith.constant 0 : i32
    %c0_i32_1 = arith.constant 0 : i32
    return %c0_i32, %c0_i32_0 : i32, i32
  }
  func.func @transform_2(%arg0: i32) -> (i32, i32) {
    %c0_i32 = arith.constant 0 : i32
    %c0_i32_0 = arith.constant 0 : i32
    %c0_i32_1 = arith.constant 0 : i32
    return %c0_i32, %c0_i32_0 : i32, i32
  }
  func.func @transform_3(%arg0: i32) -> (i32, i32) {
    %c0_i32 = arith.constant 0 : i32
    %c0_i32_0 = arith.constant 0 : i32
    %c0_i32_1 = arith.constant 0 : i32
    return %c0_i32, %c0_i32_0 : i32, i32
  }
  func.func @transform_4(%arg0: i32) -> (i32, i32) {
    %c0_i32 = arith.constant 0 : i32
    %c0_i32_0 = arith.constant 0 : i32
    %c0_i32_1 = arith.constant 0 : i32
    return %c0_i32, %c0_i32_0 : i32, i32
  }
  func.func @transform_5(%arg0: i32) -> (i32, i32) {
    %c0_i32 = arith.constant 0 : i32
    %c0_i32_0 = arith.constant 0 : i32
    %c0_i32_1 = arith.constant 0 : i32
    return %c0_i32, %c0_i32_0 : i32, i32
  }
  func.func @transform_6(%arg0: i32) -> (i32, i32) {
    %c0_i32 = arith.constant 0 : i32
    %c0_i32_0 = arith.constant 0 : i32
    %c0_i32_1 = arith.constant 0 : i32
    return %c0_i32, %c0_i32_0 : i32, i32
  }
  func.func @transform_7(%arg0: i32) -> (i32, i32) {
    %c0_i32 = arith.constant 0 : i32
    %c0_i32_0 = arith.constant 0 : i32
    return %c0_i32, %arg0 : i32, i32
  }
}

</mosaic_0001>

<llo_original>
// kernel: tpu_custom_call.1
$region0: #{tpu_custom_call.1}
  #allocation0 [shape = 'u32[]', space=smem, size = 0x4, offset = 0x4, fixed_abs, tag = 'smem constant byte address 0x4 - core index']
  #allocation1 [shape = 'u32[144,128]{1,0:T(1,128)}', space=vmem, size = 0x12000, scoped, tag = 'internal scratch']
  %s0 = inlined_call_operand.vmem [shape: f32[12,128], index: 0, kind: input, shape index: {}]
  %s1 = inlined_call_operand.vmem [shape: f32[10,12], index: 1, kind: input, shape index: {}]
  %s2 = inlined_call_operand.vmem [shape: f32[10,1], index: 2, kind: input, shape index: {}]
  %s3 = inlined_call_operand.vmem [shape: f32[6,10], index: 3, kind: input, shape index: {}]
  %s4 = inlined_call_operand.vmem [shape: f32[6,1], index: 4, kind: input, shape index: {}]
  %s5 = inlined_call_operand.vmem [shape: f32[2,6], index: 5, kind: input, shape index: {}]
  %s6 = inlined_call_operand.vmem [shape: f32[2,1], index: 6, kind: input, shape index: {}]
  %s7 = inlined_call_operand.hbm [shape: f32[2,128], index: 7, kind: output, shape index: {}]
  %s8 = sld [smem:[#allocation0]]
  $region38: #{tpu_custom_call.1} parent=0
    _
  %s10 = ssub.s32 1, %s8
  %s11 = scalar_select 0, %s10, %s8
  $region1: #{tpu_custom_call.1} parent=0
    #allocation2 [shape = 'u8[1024]{0}', space=vmem, size = 0x400, scoped, tag = 'output window, operand 0, single buffered']
    #allocation3 [shape = 's32[1]{0}', space=sflag, size = 0x4, scoped, tag = 'scoped memory for tpu_custom_call.1']
    %12 = vsyncpa [#allocation3], 0
    // Predicated region
    $region2: #{tpu_custom_call.1} parent=1 // pred_check
      _
    $region3: #{tpu_custom_call.1} parent=1 // pred_check_branch
      %14 = sbr.rel (0) target = $region5
    $region4: #{tpu_custom_call.1} parent=1 // pred_region
      _
    $region5: #{tpu_custom_call.1} parent=1 // pred_fallthru
      _
    // Predicated region
    $region6: #{tpu_custom_call.1} parent=1 // pred_check
      _
    $region7: #{tpu_custom_call.1} parent=1 // pred_check_branch
      %16 = sbr.rel (0) target = $region9
    $region8: #{tpu_custom_call.1} parent=1 // pred_region
      _
    $region9: #{tpu_custom_call.1} parent=1 // pred_fallthru
      _
    // Predicated region
    $region10: #{tpu_custom_call.1} parent=1 // pred_check
      _
    $region11: #{tpu_custom_call.1} parent=1 // pred_check_branch
      %18 = sbr.rel (0) target = $region13
    $region12: #{tpu_custom_call.1} parent=1 // pred_region
      _
    $region13: #{tpu_custom_call.1} parent=1 // pred_fallthru
      _
    // Predicated region
    $region14: #{tpu_custom_call.1} parent=1 // pred_check
      _
    $region15: #{tpu_custom_call.1} parent=1 // pred_check_branch
      %20 = sbr.rel (0) target = $region17
    $region16: #{tpu_custom_call.1} parent=1 // pred_region
      _
    $region17: #{tpu_custom_call.1} parent=1 // pred_fallthru
      _
    // Predicated region
    $region18: #{tpu_custom_call.1} parent=1 // pred_check
      _
    $region19: #{tpu_custom_call.1} parent=1 // pred_check_branch
      %22 = sbr.rel (0) target = $region21
    $region20: #{tpu_custom_call.1} parent=1 // pred_region
      _
    $region21: #{tpu_custom_call.1} parent=1 // pred_fallthru
      _
    // Predicated region
    $region22: #{tpu_custom_call.1} parent=1 // pred_check
      _
    $region23: #{tpu_custom_call.1} parent=1 // pred_check_branch
      %24 = sbr.rel (0) target = $region25
    $region24: #{tpu_custom_call.1} parent=1 // pred_region
      _
    $region25: #{tpu_custom_call.1} parent=1 // pred_fallthru
      _
    // Predicated region
    $region26: #{tpu_custom_call.1} parent=1 // pred_check
      _
    $region27: #{tpu_custom_call.1} parent=1 // pred_check_branch
      %26 = sbr.rel (0) target = $region29
    $region28: #{tpu_custom_call.1} parent=1 // pred_region
      _
    $region29: #{tpu_custom_call.1} parent=1 // pred_fallthru
      _
    %v27 = vld [vmem:[%s0] sm:$0xff]
    %v28 = vld [vmem:[%s0 + $0x8] sm:$0xf]
    %v29 = vld [vmem:[%s1] sm:$0xff]
    %v30 = vld [vmem:[%s1 + $0x8] sm:$0x3]
    %v31 = vld [vmem:[%s2] sm:$0xff]
    %v32 = vld [vmem:[%s2 + $0x8] sm:$0x3]
    %34 = vset.pattern.permute.xlu0 0
    %35 = vperm.xlu0 %34, %v31
    %v36 = vpop.permute.xlu0 %35
    %39 = vset.pattern.permute.xlu0 0
    %40 = vperm.xlu0 %39, %v32
    %v41 = vpop.permute.xlu0 %40
    %vm43 = vcmask 97280
    %v45 = vsel %vm43, %v29, 0
    %v48 = vsel %vm43, %v30, 0
    %vm50 = vcmask 1043456
    %v52 = vsel %vm50, %v28, 0
    %54 = vmatprep.subr.mxu0 0.0
    %55 = vmatpush1.msra.mxu0 %v27
    %56 = vmatprep.subr.mxu0 0.0
    %57 = vmatpush1.msra.mxu0 %v52
    %58 = vmatprep.subr.mxu0 0.0
    %59 = vmatpush1.msra.mxu0 0.0
    %60 = vmatprep.subr.mxu0 0.0
    %61 = vmatpush1.msra.mxu0 0.0
    %62 = vmatprep.subr.mxu0 0.0
    %63 = vmatpush1.msra.mxu0 0.0
    %64 = vmatprep.subr.mxu0 0.0
    %65 = vmatpush1.msra.mxu0 0.0
    %66 = vmatprep.subr.mxu0 0.0
    %67 = vmatpush1.msra.mxu0 0.0
    %68 = vmatprep.subr.mxu0 0.0
    %69 = vmatpush1.msra.mxu0 0.0
    %70 = vmatprep.subr.mxu0 0.0
    %71 = vmatpush1.msra.mxu0 0.0
    %72 = vmatprep.subr.mxu0 0.0
    %73 = vmatpush1.msra.mxu0 0.0
    %74 = vmatprep.subr.mxu0 0.0
    %75 = vmatpush1.msra.mxu0 0.0
    %76 = vmatprep.subr.mxu0 0.0
    %77 = vmatpush1.msra.mxu0 0.0
    %78 = vmatprep.subr.mxu0 0.0
    %79 = vmatpush1.msra.mxu0 0.0
    %80 = vmatprep.subr.mxu0 0.0
    %81 = vmatpush1.msra.mxu0 0.0
    %82 = vmatprep.subr.mxu0 0.0
    %83 = vmatpush1.msra.mxu0 0.0
    %84 = vmatprep.subr.mxu0 0.0
    %85 = vmatpush1.msra.mxu0 0.0
    %86 = vmatprep.subr.mxu0 0.0
    %87 = vmatpush1.msra.mxu0 0.0
    %88 = vmatprep.subr.mxu0 0.0
    %89 = vmatpush1.msra.mxu0 0.0
    %90 = vmatprep.subr.mxu0 0.0
    %91 = vmatpush1.msra.mxu0 0.0
    %92 = vmatprep.subr.mxu0 0.0
    %93 = vmatpush1.msra.mxu0 0.0
    %94 = vmatprep.subr.mxu0 0.0
    %95 = vmatpush1.msra.mxu0 0.0
    %96 = vmatprep.subr.mxu0 0.0
    %97 = vmatpush1.msra.mxu0 0.0
    %98 = vmatprep.subr.mxu0 0.0
    %99 = vmatpush1.msra.mxu0 0.0
    %100 = vmatprep.subr.mxu0 0.0
    %101 = vmatpush1.msra.mxu0 0.0
    %102 = vmatprep.subr.mxu0 0.0
    %103 = vmatpush1.msra.mxu0 0.0
    %104 = vmatprep.subr.mxu0 0.0
    %105 = vmatpush1.msra.mxu0 0.0
    %106 = vmatprep.subr.mxu0 0.0
    %107 = vmatpush1.msra.mxu0 0.0
    %108 = vmatprep.subr.mxu0 0.0
    %109 = vmatpush1.msra.mxu0 0.0
    %110 = vmatprep.subr.mxu0 0.0
    %111 = vmatpush1.msra.mxu0 0.0
    %112 = vmatprep.subr.mxu0 0.0
    %113 = vmatpush1.msra.mxu0 0.0
    %114 = vmatprep.subr.mxu0 0.0
    %115 = vmatpush1.msra.mxu0 0.0
    %116 = vmatprep.subr.mxu0 0.0
    %117 = vmatpush1.msra.mxu0 0.0
    %118 = vmatprep.mubr.f32.mxu0 0.0
    %119 = vmatmul.mubr.f32.gmra.mrb[0].mxu0 %v45
    %v120 = vpop.f32.mrb[0].mxu0
    %v121 = vadd.f32 %v36, %v120
    %v122 = vpop.f32.mrb[0].mxu0
    %123 = vmatprep.mubr.f32.mxu0 0.0
    %124 = vmatmul.mubr.f32.gmra.mrb[0].mxu0 %v48
    %v125 = vpop.f32.mrb[0].mxu0
    %v126 = vadd.f32 %v41, %v125
    %v127 = vpop.f32.mrb[0].mxu0
    %128 = vdwg.mxu0
    %v129 = vmax.f32 %v121, 0.0
    %v130 = vmax.f32 %v126, 0.0
    %v131 = vld [vmem:[%s3] sm:$0x3f]
    %v132 = vld [vmem:[%s4] sm:$0x3f]
    %134 = vset.pattern.permute.xlu0 0
    %135 = vperm.xlu0 %134, %v132
    %v136 = vpop.permute.xlu0 %135
    %vm138 = vcmask 80896
    %v140 = vsel %vm138, %v131, 0
    %vm142 = vcmask 1041408
    %v144 = vsel %vm142, %v130, 0
    %146 = vmatprep.subr.mxu0 0.0
    %147 = vmatpush1.msra.mxu0 %v129
    %148 = vmatprep.subr.mxu0 0.0
    %149 = vmatpush1.msra.mxu0 %v144
    %150 = vmatprep.subr.mxu0 0.0
    %151 = vmatpush1.msra.mxu0 0.0
    %152 = vmatprep.subr.mxu0 0.0
    %153 = vmatpush1.msra.mxu0 0.0
    %154 = vmatprep.subr.mxu0 0.0
    %155 = vmatpush1.msra.mxu0 0.0
    %156 = vmatprep.subr.mxu0 0.0
    %157 = vmatpush1.msra.mxu0 0.0
    %158 = vmatprep.subr.mxu0 0.0
    %159 = vmatpush1.msra.mxu0 0.0
    %160 = vmatprep.subr.mxu0 0.0
    %161 = vmatpush1.msra.mxu0 0.0
    %162 = vmatprep.subr.mxu0 0.0
    %163 = vmatpush1.msra.mxu0 0.0
    %164 = vmatprep.subr.mxu0 0.0
    %165 = vmatpush1.msra.mxu0 0.0
    %166 = vmatprep.subr.mxu0 0.0
    %167 = vmatpush1.msra.mxu0 0.0
    %168 = vmatprep.subr.mxu0 0.0
    %169 = vmatpush1.msra.mxu0 0.0
    %170 = vmatprep.subr.mxu0 0.0
    %171 = vmatpush1.msra.mxu0 0.0
    %172 = vmatprep.subr.mxu0 0.0
    %173 = vmatpush1.msra.mxu0 0.0
    %174 = vmatprep.subr.mxu0 0.0
    %175 = vmatpush1.msra.mxu0 0.0
    %176 = vmatprep.subr.mxu0 0.0
    %177 = vmatpush1.msra.mxu0 0.0
    %178 = vmatprep.subr.mxu0 0.0
    %179 = vmatpush1.msra.mxu0 0.0
    %180 = vmatprep.subr.mxu0 0.0
    %181 = vmatpush1.msra.mxu0 0.0
    %182 = vmatprep.subr.mxu0 0.0
    %183 = vmatpush1.msra.mxu0 0.0
    %184 = vmatprep.subr.mxu0 0.0
    %185 = vmatpush1.msra.mxu0 0.0
    %186 = vmatprep.subr.mxu0 0.0
    %187 = vmatpush1.msra.mxu0 0.0
    %188 = vmatprep.subr.mxu0 0.0
    %189 = vmatpush1.msra.mxu0 0.0
    %190 = vmatprep.subr.mxu0 0.0
    %191 = vmatpush1.msra.mxu0 0.0
    %192 = vmatprep.subr.mxu0 0.0
    %193 = vmatpush1.msra.mxu0 0.0
    %194 = vmatprep.subr.mxu0 0.0
    %195 = vmatpush1.msra.mxu0 0.0
    %196 = vmatprep.subr.mxu0 0.0
    %197 = vmatpush1.msra.mxu0 0.0
    %198 = vmatprep.subr.mxu0 0.0
    %199 = vmatpush1.msra.mxu0 0.0
    %200 = vmatprep.subr.mxu0 0.0
    %201 = vmatpush1.msra.mxu0 0.0
    %202 = vmatprep.subr.mxu0 0.0
    %203 = vmatpush1.msra.mxu0 0.0
    %204 = vmatprep.subr.mxu0 0.0
    %205 = vmatpush1.msra.mxu0 0.0
    %206 = vmatprep.subr.mxu0 0.0
    %207 = vmatpush1.msra.mxu0 0.0
    %208 = vmatprep.subr.mxu0 0.0
    %209 = vmatpush1.msra.mxu0 0.0
    %210 = vmatprep.mubr.f32.mxu0 0.0
    %211 = vmatmul.mubr.f32.gmra.mrb[0].mxu0 %v140
    %v212 = vpop.f32.mrb[0].mxu0
    %v213 = vadd.f32 %v136, %v212
    %v214 = vpop.f32.mrb[0].mxu0
    %215 = vdwg.mxu0
    %v216 = vmax.f32 %v213, 0.0
    %v217 = vld [vmem:[%s5] sm:$0x3]
    %v218 = vld [vmem:[%s6] sm:$0x3]
    %220 = vset.pattern.permute.xlu0 0
    %221 = vperm.xlu0 %220, %v218
    %v222 = vpop.permute.xlu0 %221
    %vm224 = vcmask 48128
    %v226 = vsel %vm224, %v217, 0
    %vm228 = vcmask 1045504
    %v230 = vsel %vm228, %v216, 0
    %232 = vmatprep.subr.mxu0 0.0
    %233 = vmatpush1.msra.mxu0 %v230
    %234 = vmatprep.subr.mxu0 0.0
    %235 = vmatpush1.msra.mxu0 0.0
    %236 = vmatprep.subr.mxu0 0.0
    %237 = vmatpush1.msra.mxu0 0.0
    %238 = vmatprep.subr.mxu0 0.0
    %239 = vmatpush1.msra.mxu0 0.0
    %240 = vmatprep.subr.mxu0 0.0
    %241 = vmatpush1.msra.mxu0 0.0
    %242 = vmatprep.subr.mxu0 0.0
    %243 = vmatpush1.msra.mxu0 0.0
    %244 = vmatprep.subr.mxu0 0.0
    %245 = vmatpush1.msra.mxu0 0.0
    %246 = vmatprep.subr.mxu0 0.0
    %247 = vmatpush1.msra.mxu0 0.0
    %248 = vmatprep.subr.mxu0 0.0
    %249 = vmatpush1.msra.mxu0 0.0
    %250 = vmatprep.subr.mxu0 0.0
    %251 = vmatpush1.msra.mxu0 0.0
    %252 = vmatprep.subr.mxu0 0.0
    %253 = vmatpush1.msra.mxu0 0.0
    %254 = vmatprep.subr.mxu0 0.0
    %255 = vmatpush1.msra.mxu0 0.0
    %256 = vmatprep.subr.mxu0 0.0
    %257 = vmatpush1.msra.mxu0 0.0
    %258 = vmatprep.subr.mxu0 0.0
    %259 = vmatpush1.msra.mxu0 0.0
    %260 = vmatprep.subr.mxu0 0.0
    %261 = vmatpush1.msra.mxu0 0.0
    %262 = vmatprep.subr.mxu0 0.0
    %263 = vmatpush1.msra.mxu0 0.0
    %264 = vmatprep.subr.mxu0 0.0
    %265 = vmatpush1.msra.mxu0 0.0
    %266 = vmatprep.subr.mxu0 0.0
    %267 = vmatpush1.msra.mxu0 0.0
    %268 = vmatprep.subr.mxu0 0.0
    %269 = vmatpush1.msra.mxu0 0.0
    %270 = vmatprep.subr.mxu0 0.0
    %271 = vmatpush1.msra.mxu0 0.0
    %272 = vmatprep.subr.mxu0 0.0
    %273 = vmatpush1.msra.mxu0 0.0
    %274 = vmatprep.subr.mxu0 0.0
    %275 = vmatpush1.msra.mxu0 0.0
    %276 = vmatprep.subr.mxu0 0.0
    %277 = vmatpush1.msra.mxu0 0.0
    %278 = vmatprep.subr.mxu0 0.0
    %279 = vmatpush1.msra.mxu0 0.0
    %280 = vmatprep.subr.mxu0 0.0
    %281 = vmatpush1.msra.mxu0 0.0
    %282 = vmatprep.subr.mxu0 0.0
    %283 = vmatpush1.msra.mxu0 0.0
    %284 = vmatprep.subr.mxu0 0.0
    %285 = vmatpush1.msra.mxu0 0.0
    %286 = vmatprep.subr.mxu0 0.0
    %287 = vmatpush1.msra.mxu0 0.0
    %288 = vmatprep.subr.mxu0 0.0
    %289 = vmatpush1.msra.mxu0 0.0
    %290 = vmatprep.subr.mxu0 0.0
    %291 = vmatpush1.msra.mxu0 0.0
    %292 = vmatprep.subr.mxu0 0.0
    %293 = vmatpush1.msra.mxu0 0.0
    %294 = vmatprep.subr.mxu0 0.0
    %295 = vmatpush1.msra.mxu0 0.0
    %296 = vmatprep.mubr.f32.mxu0 0.0
    %297 = vmatmul.mubr.f32.gmra.mrb[0].mxu0 %v226
    %v298 = vpop.f32.mrb[0].mxu0
    %v299 = vadd.f32 %v222, %v298
    %v300 = vpop.f32.mrb[0].mxu0
    %301 = vdwg.mxu0
    %302 = vst [vmem:[#allocation2] sm:$0x3] %v299
    // Predicated region
    $region30: #{tpu_custom_call.1} parent=1 // pred_check
      _
    $region31: #{tpu_custom_call.1} parent=1 // pred_check_branch
      %304 = sbr.rel (0) target = $region33
    $region32: #{tpu_custom_call.1} parent=1 // pred_region
      %s306 = ssub.s32 32, 32
      %307 = vsyncadd [#allocation3], %s306
      %s309 = sshll.u32 [#allocation2], 4
      %s310 = int_to_ptr.vmem [resolvable:$true] %s309
      %312 = dma.vmem_to_hbm [thread:$0]  %s310, 32, %s7, [#allocation3]
    $region33: #{tpu_custom_call.1} parent=1 // pred_fallthru
      _
    // Predicated region
    $region34: #{tpu_custom_call.1} parent=1 // pred_check
      _
    $region35: #{tpu_custom_call.1} parent=1 // pred_check_branch
      %314 = sbr.rel (0) target = $region37
    $region36: #{tpu_custom_call.1} parent=1 // pred_region
      %315 = dma.done [#allocation3], 32
    $region37: #{tpu_custom_call.1} parent=1 // pred_fallthru
      _
    %316 = vsyncpa [#allocation3], 1

</llo_original>
